<compile_context>
chip_gen: v6e
topology: v6e:2x2x1
jax: 0.10.0
libtpu: 0.0.40
codegen_flags: <defaults>
</compile_context>

<pallas_src>
import functools

import jax
import jax.numpy as jnp
from jax.experimental import pallas as pl
from jax.experimental.pallas import tpu as pltpu

_SUBLANE = 8


def _round_up(x, m):
    return (x + m - 1) // m * m


def _leaky_relu(x, slope=0.1):
    return jnp.where(x > 0, x, slope * x)


def deep_mlp_d_kernel(x_ref, w1_ref, b1_ref, w2_ref, b2_ref, w3_ref, b3_ref, o_ref):
    # Cast x to bf16 in VMEM right before the MXU (no wrapper-side cast / extra HBM pass).
    x = x_ref[...].astype(jnp.bfloat16)
    # layer 1: (tile_b, in) @ (in, hid), f32 accumulation on the MXU.
    h = jnp.dot(x, w1_ref[...], preferred_element_type=jnp.float32)
    h = _leaky_relu(h + b1_ref[...])
    # layer 2
    h = jnp.dot(h.astype(jnp.bfloat16), w2_ref[...], preferred_element_type=jnp.float32)
    h = _leaky_relu(h + b2_ref[...])
    # layer 3: (tile_b, hid) @ (hid, out_f); only the real out_f columns are stored to HBM.
    h = jnp.dot(h.astype(jnp.bfloat16), w3_ref[...], preferred_element_type=jnp.float32)
    o_ref[...] = jax.nn.sigmoid(h + b3_ref[...]).astype(o_ref.dtype)


@functools.partial(jax.jit, static_argnames=("tile_b",))
def deep_mlp_d_forward(x, w1, b1, w2, b2, w3, b3, *, tile_b=4096):
    batch, in_f = x.shape
    hidden = w1.shape[1]
    out_f = w3.shape[1]

    # Batch tile: multiple of 8 sublanes, large enough to amortize per-step overhead,
    # clamped so small batches run in a single grid step with no excess padded rows.
    tile_b = _round_up(max(1, tile_b), _SUBLANE)
    tile_b = min(tile_b, _round_up(batch, _SUBLANE))
    grid = (pl.cdiv(batch, tile_b),)

    # Weights as bf16 (tiny, VMEM-resident across all grid steps); biases stay f32.
    w1_b = w1.astype(jnp.bfloat16)
    w2_b = w2.astype(jnp.bfloat16)
    w3_b = w3.astype(jnp.bfloat16)

    resident = lambda i: (0, 0)  # same block every grid step -> stays resident in VMEM

    flops = 2 * batch * (in_f * hidden + hidden * hidden + hidden * out_f)
    bytes_accessed = (
        x.size * 4                                   # f32 x read
        + batch * out_f * 4                          # f32 output write (unpadded)
        + (w1_b.size + w2_b.size + w3_b.size) * 2    # bf16 weights
        + (b1.size + b2.size + b3.size) * 4          # f32 biases
    )

    return pl.pallas_call(
        deep_mlp_d_kernel,
        out_shape=jax.ShapeDtypeStruct((batch, out_f), jnp.float32),
        grid=grid,
        in_specs=[
            pl.BlockSpec((tile_b, in_f), lambda i: (i, 0)),
            pl.BlockSpec((in_f, hidden), resident),
            pl.BlockSpec((1, hidden), resident),
            pl.BlockSpec((hidden, hidden), resident),
            pl.BlockSpec((1, hidden), resident),
            pl.BlockSpec((hidden, out_f), resident),
            pl.BlockSpec((1, out_f), resident),
        ],
        out_specs=pl.BlockSpec((tile_b, out_f), lambda i: (i, 0)),
        compiler_params=pltpu.CompilerParams(
            dimension_semantics=("parallel",),
            vmem_limit_bytes=32 * 1024 * 1024,
        ),
        cost_estimate=pl.CostEstimate(
            flops=flops,
            transcendentals=batch * out_f,
            bytes_accessed=bytes_accessed,
        ),
    )(x, w1_b, b1, w2_b, b2, w3_b, b3)


def init_params(key, input_size, hidden_size, output_size):
    """Deterministic init mimicking PyTorch nn.Linear default U(-1/sqrt(fan_in), +)."""
    def linear(k, fan_in, fan_out):
        kw, kb = jax.random.split(k)
        bound = 1.0 / jnp.sqrt(fan_in)
        # stored as (in, out) == PyTorch weight.T so the kernel does y = x @ W + b
        w = jax.random.uniform(kw, (fan_in, fan_out), jnp.float32, -bound, bound)
        b = jax.random.uniform(kb, (1, fan_out), jnp.float32, -bound, bound)
        return w, b

    k1, k2, k3 = jax.random.split(key, 3)
    w1, b1 = linear(k1, input_size, hidden_size)
    w2, b2 = linear(k2, hidden_size, hidden_size)
    w3, b3 = linear(k3, hidden_size, output_size)
    return w1, b1, w2, b2, w3, b3


def _reference(x, w1, b1, w2, b2, w3, b3):
    # Mirrors the kernel's bf16-operand / f32-accumulate numerics.
    h = jnp.dot(x.astype(jnp.bfloat16), w1.astype(jnp.bfloat16),
                preferred_element_type=jnp.float32) + b1
    h = jnp.where(h > 0, h, 0.1 * h)
    h = jnp.dot(h.astype(jnp.bfloat16), w2.astype(jnp.bfloat16),
                preferred_element_type=jnp.float32) + b2
    h = jnp.where(h > 0, h, 0.1 * h)
    h = jnp.dot(h.astype(jnp.bfloat16), w3.astype(jnp.bfloat16),
                preferred_element_type=jnp.float32) + b3
    return jax.nn.sigmoid(h)


if __name__ == "__main__":
    input_size, hidden_size, output_size = 16, 32, 1
    batch = 8

    key = jax.random.PRNGKey(0)
    kx, kp = jax.random.split(key)
    x = jax.random.normal(kx, (batch, input_size), jnp.float32)
    params = init_params(kp, input_size, hidden_size, output_size)

    out = deep_mlp_d_forward(x, *params)
    out = jax.block_until_ready(out)

    ref = _reference(x, *params)
    assert out.shape == (batch, output_size), out.shape
    assert jnp.allclose(out, ref, atol=2e-3, rtol=2e-3), float(jnp.max(jnp.abs(out - ref)))

    print("KERNEL_OK")
</pallas_src>

<mosaic_0001>
module attributes {stable_mosaic.version = 11 : i64} {
  func.func @deep_mlp_d_kernel(%arg0: i32, %arg1: memref<8x16xf32, #tpu.memory_space<vmem>>, %arg2: memref<16x32xbf16, #tpu.memory_space<vmem>>, %arg3: memref<1x32xf32, #tpu.memory_space<vmem>>, %arg4: memref<32x32xbf16, #tpu.memory_space<vmem>>, %arg5: memref<1x32xf32, #tpu.memory_space<vmem>>, %arg6: memref<32x1xbf16, #tpu.memory_space<vmem>>, %arg7: memref<1x1xf32, #tpu.memory_space<vmem>>, %arg8: memref<8x1xf32, #tpu.memory_space<vmem>>) attributes {dimension_semantics = [#tpu.dimension_semantics<parallel>], iteration_bounds = array<i64: 1>, scalar_prefetch = 0 : i64, scratch_operands = 0 : i64, tpu.core_type = #tpu.core_type<tc>, window_params = [{transform_indices = @transform_0, window_bounds = array<i64: 8, 16>}, {pipeline_mode = #tpu.pipeline_mode<synchronous>, transform_indices = @transform_1, window_bounds = array<i64: 16, 32>}, {pipeline_mode = #tpu.pipeline_mode<synchronous>, transform_indices = @transform_2, window_bounds = array<i64: 1, 32>}, {pipeline_mode = #tpu.pipeline_mode<synchronous>, transform_indices = @transform_3, window_bounds = array<i64: 32, 32>}, {pipeline_mode = #tpu.pipeline_mode<synchronous>, transform_indices = @transform_4, window_bounds = array<i64: 1, 32>}, {pipeline_mode = #tpu.pipeline_mode<synchronous>, transform_indices = @transform_5, window_bounds = array<i64: 32, 1>}, {pipeline_mode = #tpu.pipeline_mode<synchronous>, transform_indices = @transform_6, window_bounds = array<i64: 1, 1>}, {transform_indices = @transform_7, window_bounds = array<i64: 8, 1>}]} {
    %c0 = arith.constant 0 : index
    %c0_0 = arith.constant 0 : index
    %0 = vector.load %arg1[%c0, %c0_0] : memref<8x16xf32, #tpu.memory_space<vmem>>, vector<8x16xf32>
    %1 = arith.truncf %0 : vector<8x16xf32> to vector<8x16xbf16>
    %c0_1 = arith.constant 0 : index
    %c0_2 = arith.constant 0 : index
    %2 = vector.load %arg2[%c0_1, %c0_2] : memref<16x32xbf16, #tpu.memory_space<vmem>>, vector<16x32xbf16>
    %cst = arith.constant dense<0.000000e+00> : vector<8x32xf32>
    %3 = tpu.matmul %1, %2, %cst {dimension_numbers = #tpu.dot_dimension_numbers<[1], [0], [0], [1], [0, 0, 1, 1], [], []>} : vector<8x16xbf16>, vector<16x32xbf16>, vector<8x32xf32> -> vector<8x32xf32>
    %c0_3 = arith.constant 0 : index
    %c0_4 = arith.constant 0 : index
    %4 = vector.load %arg3[%c0_3, %c0_4] : memref<1x32xf32, #tpu.memory_space<vmem>>, vector<1x32xf32>
    %5 = vector.broadcast %4 : vector<1x32xf32> to vector<8x32xf32>
    %6 = arith.addf %3, %5 : vector<8x32xf32>
    %cst_5 = arith.constant 0.000000e+00 : f32
    %7 = vector.broadcast %cst_5 : f32 to vector<8x32xf32>
    %8 = arith.cmpf ogt, %6, %7 : vector<8x32xf32>
    %cst_6 = arith.constant 1.000000e-01 : f32
    %9 = vector.broadcast %cst_6 : f32 to vector<8x32xf32>
    %10 = arith.mulf %9, %6 : vector<8x32xf32>
    %11 = arith.select %8, %6, %10 : vector<8x32xi1>, vector<8x32xf32>
    %12 = arith.truncf %11 : vector<8x32xf32> to vector<8x32xbf16>
    %c0_7 = arith.constant 0 : index
    %c0_8 = arith.constant 0 : index
    %13 = vector.load %arg4[%c0_7, %c0_8] : memref<32x32xbf16, #tpu.memory_space<vmem>>, vector<32x32xbf16>
    %cst_9 = arith.constant dense<0.000000e+00> : vector<8x32xf32>
    %14 = tpu.matmul %12, %13, %cst_9 {dimension_numbers = #tpu.dot_dimension_numbers<[1], [0], [0], [1], [0, 0, 1, 1], [], []>} : vector<8x32xbf16>, vector<32x32xbf16>, vector<8x32xf32> -> vector<8x32xf32>
    %c0_10 = arith.constant 0 : index
    %c0_11 = arith.constant 0 : index
    %15 = vector.load %arg5[%c0_10, %c0_11] : memref<1x32xf32, #tpu.memory_space<vmem>>, vector<1x32xf32>
    %16 = vector.broadcast %15 : vector<1x32xf32> to vector<8x32xf32>
    %17 = arith.addf %14, %16 : vector<8x32xf32>
    %cst_12 = arith.constant 0.000000e+00 : f32
    %18 = vector.broadcast %cst_12 : f32 to vector<8x32xf32>
    %19 = arith.cmpf ogt, %17, %18 : vector<8x32xf32>
    %cst_13 = arith.constant 1.000000e-01 : f32
    %20 = vector.broadcast %cst_13 : f32 to vector<8x32xf32>
    %21 = arith.mulf %20, %17 : vector<8x32xf32>
    %22 = arith.select %19, %17, %21 : vector<8x32xi1>, vector<8x32xf32>
    %23 = arith.truncf %22 : vector<8x32xf32> to vector<8x32xbf16>
    %c0_14 = arith.constant 0 : index
    %c0_15 = arith.constant 0 : index
    %24 = vector.load %arg6[%c0_14, %c0_15] : memref<32x1xbf16, #tpu.memory_space<vmem>>, vector<32x1xbf16>
    %cst_16 = arith.constant dense<0.000000e+00> : vector<8x1xf32>
    %25 = tpu.matmul %23, %24, %cst_16 {dimension_numbers = #tpu.dot_dimension_numbers<[1], [0], [0], [1], [0, 0, 1, 1], [], []>} : vector<8x32xbf16>, vector<32x1xbf16>, vector<8x1xf32> -> vector<8x1xf32>
    %c0_17 = arith.constant 0 : index
    %c0_18 = arith.constant 0 : index
    %26 = vector.load %arg7[%c0_17, %c0_18] : memref<1x1xf32, #tpu.memory_space<vmem>>, vector<1x1xf32>
    %27 = vector.broadcast %26 : vector<1x1xf32> to vector<8x1xf32>
    %28 = arith.addf %25, %27 : vector<8x1xf32>
    %29 = arith.negf %28 : vector<8x1xf32>
    %30 = math.exp %29 : vector<8x1xf32>
    %cst_19 = arith.constant 1.000000e+00 : f32
    %31 = vector.broadcast %cst_19 : f32 to vector<8x1xf32>
    %32 = arith.addf %31, %30 : vector<8x1xf32>
    %33 = arith.divf %31, %32 : vector<8x1xf32>
    %c0_20 = arith.constant 0 : index
    %c0_21 = arith.constant 0 : index
    %34 = vector.load %arg8[%c0_20, %c0_21] : memref<8x1xf32, #tpu.memory_space<vmem>>, vector<8x1xf32>
    tpu.vector_store %arg8[%c0_20, %c0_21], %33 {strides = array<i32>} : memref<8x1xf32, #tpu.memory_space<vmem>>, vector<8x1xf32>,
    return
  }
  func.func @transform_0(%arg0: i32) -> (i32, i32) {
    %c0_i32 = arith.constant 0 : i32
    %c0_i32_0 = arith.constant 0 : i32
    return %arg0, %c0_i32 : i32, i32
  }
  func.func @transform_1(%arg0: i32) -> (i32, i32) {
    %c0_i32 = arith.constant 0 : i32
    %c0_i32_0 = arith.constant 0 : i32
    %c0_i32_1 = arith.constant 0 : i32
    return %c0_i32, %c0_i32_0 : i32, i32
  }
  func.func @transform_2(%arg0: i32) -> (i32, i32) {
    %c0_i32 = arith.constant 0 : i32
    %c0_i32_0 = arith.constant 0 : i32
    %c0_i32_1 = arith.constant 0 : i32
    return %c0_i32, %c0_i32_0 : i32, i32
  }
  func.func @transform_3(%arg0: i32) -> (i32, i32) {
    %c0_i32 = arith.constant 0 : i32
    %c0_i32_0 = arith.constant 0 : i32
    %c0_i32_1 = arith.constant 0 : i32
    return %c0_i32, %c0_i32_0 : i32, i32
  }
  func.func @transform_4(%arg0: i32) -> (i32, i32) {
    %c0_i32 = arith.constant 0 : i32
    %c0_i32_0 = arith.constant 0 : i32
    %c0_i32_1 = arith.constant 0 : i32
    return %c0_i32, %c0_i32_0 : i32, i32
  }
  func.func @transform_5(%arg0: i32) -> (i32, i32) {
    %c0_i32 = arith.constant 0 : i32
    %c0_i32_0 = arith.constant 0 : i32
    %c0_i32_1 = arith.constant 0 : i32
    return %c0_i32, %c0_i32_0 : i32, i32
  }
  func.func @transform_6(%arg0: i32) -> (i32, i32) {
    %c0_i32 = arith.constant 0 : i32
    %c0_i32_0 = arith.constant 0 : i32
    %c0_i32_1 = arith.constant 0 : i32
    return %c0_i32, %c0_i32_0 : i32, i32
  }
  func.func @transform_7(%arg0: i32) -> (i32, i32) {
    %c0_i32 = arith.constant 0 : i32
    %c0_i32_0 = arith.constant 0 : i32
    return %arg0, %c0_i32 : i32, i32
  }
}

</mosaic_0001>

<llo_original>
// kernel: deep_mlp_d_forward.1
$region0: #{deep_mlp_d_forward.1}
  #allocation0 [shape = 'u32[]', space=smem, size = 0x4, offset = 0x4, fixed_abs, tag = 'smem constant byte address 0x4 - core index']
  #allocation1 [shape = 'u32[144,128]{1,0:T(1,128)}', space=vmem, size = 0x12000, scoped, tag = 'internal scratch']
  #allocation2 [shape = 'f32[1,1]{1,0:T(1,128)S(1)}', space=vmem, size = 0x200, scoped, tag = 'scoped memory for deep_mlp_d_forward.1']
  %s0 = inlined_call_operand.vmem [shape: f32[8,16], index: 0, kind: input, shape index: {}]
  %s1 = inlined_call_operand.vmem [shape: bf16[16,32], index: 1, kind: input, shape index: {}]
  %s2 = inlined_call_operand.vmem [shape: f32[1,32], index: 2, kind: input, shape index: {}]
  %s3 = inlined_call_operand.vmem [shape: bf16[32,32], index: 3, kind: input, shape index: {}]
  %s4 = inlined_call_operand.vmem [shape: f32[1,32], index: 4, kind: input, shape index: {}]
  %s5 = inlined_call_operand.vmem [shape: bf16[32,1], index: 5, kind: input, shape index: {}]
  %s6 = inlined_call_operand.<no memory space> [shape: f32[1,1], index: 6, kind: input, shape index: {}]
  %s7 = inlined_call_operand.vmem [shape: f32[8,1], index: 7, kind: output, shape index: {}]
  %s8 = sld [smem:[#allocation0]]
  $region38: #{deep_mlp_d_forward.1} parent=0
    _
  %s10 = ssub.s32 1, %s8
  %s11 = scalar_select 0, %s10, %s8
  %v12 = vstv %s6
  %13 = vst [vmem:[#allocation2] sm:$0x1] %v12
  // Predicated region
  $region2: #{deep_mlp_d_forward.1} parent=0 // pred_check
    _
  $region3: #{deep_mlp_d_forward.1} parent=0 // pred_check_branch
    %15 = sbr.rel (0) target = $region5
  $region4: #{deep_mlp_d_forward.1} parent=0 // pred_region
    _
  $region5: #{deep_mlp_d_forward.1} parent=0 // pred_fallthru
    _
  // Predicated region
  $region6: #{deep_mlp_d_forward.1} parent=0 // pred_check
    _
  $region7: #{deep_mlp_d_forward.1} parent=0 // pred_check_branch
    %17 = sbr.rel (0) target = $region9
  $region8: #{deep_mlp_d_forward.1} parent=0 // pred_region
    _
  $region9: #{deep_mlp_d_forward.1} parent=0 // pred_fallthru
    _
  // Predicated region
  $region10: #{deep_mlp_d_forward.1} parent=0 // pred_check
    _
  $region11: #{deep_mlp_d_forward.1} parent=0 // pred_check_branch
    %19 = sbr.rel (0) target = $region13
  $region12: #{deep_mlp_d_forward.1} parent=0 // pred_region
    _
  $region13: #{deep_mlp_d_forward.1} parent=0 // pred_fallthru
    _
  // Predicated region
  $region14: #{deep_mlp_d_forward.1} parent=0 // pred_check
    _
  $region15: #{deep_mlp_d_forward.1} parent=0 // pred_check_branch
    %21 = sbr.rel (0) target = $region17
  $region16: #{deep_mlp_d_forward.1} parent=0 // pred_region
    _
  $region17: #{deep_mlp_d_forward.1} parent=0 // pred_fallthru
    _
  // Predicated region
  $region18: #{deep_mlp_d_forward.1} parent=0 // pred_check
    _
  $region19: #{deep_mlp_d_forward.1} parent=0 // pred_check_branch
    %23 = sbr.rel (0) target = $region21
  $region20: #{deep_mlp_d_forward.1} parent=0 // pred_region
    _
  $region21: #{deep_mlp_d_forward.1} parent=0 // pred_fallthru
    _
  // Predicated region
  $region22: #{deep_mlp_d_forward.1} parent=0 // pred_check
    _
  $region23: #{deep_mlp_d_forward.1} parent=0 // pred_check_branch
    %25 = sbr.rel (0) target = $region25
  $region24: #{deep_mlp_d_forward.1} parent=0 // pred_region
    _
  $region25: #{deep_mlp_d_forward.1} parent=0 // pred_fallthru
    _
  // Predicated region
  $region26: #{deep_mlp_d_forward.1} parent=0 // pred_check
    _
  $region27: #{deep_mlp_d_forward.1} parent=0 // pred_check_branch
    %27 = sbr.rel (0) target = $region29
  $region28: #{deep_mlp_d_forward.1} parent=0 // pred_region
    _
  $region29: #{deep_mlp_d_forward.1} parent=0 // pred_fallthru
    _
  %v29 = vld [vmem:[%s0] sm:$0xff]
  %v30 = vpack.c.bf16 %v29, %v29
  %v31 = vld [vmem:[%s1] sm:$0xf]
  %v32 = vld [vmem:[%s1 + $0x4] sm:$0xf]
  %v33 = vld [vmem:[%s2] sm:$0x1]
  %v35 = vlaneseq
  %v36 = vshrl.u32 %v35, 7
  %v37 = vsub.s32 0, %v36
  %v38 = vrot.slane %v33, %v37
  %v42 = vunpack.c.l.b16 %v31
  %v43 = vunpack.c.l.b16 %v32
  %v44 = vpack.c.b16 %v43, %v42
  %vm46 = vcmask 130048
  %v48 = vsel %vm46, %v30, 0
  %50 = vmatprep.subr.bf16.mxu0 0
  %51 = vmatpush1.bf16.msra.mxu0 0
  %52 = vmatprep.subr.bf16.mxu0 0
  %53 = vmatpush1.bf16.msra.mxu0 0
  %54 = vmatprep.subr.bf16.mxu0 0
  %55 = vmatpush1.bf16.msra.mxu0 0
  %56 = vmatprep.subr.bf16.mxu0 0
  %57 = vmatpush1.bf16.msra.mxu0 0
  %58 = vmatprep.subr.bf16.mxu0 0
  %59 = vmatpush1.bf16.msra.mxu0 0
  %60 = vmatprep.subr.bf16.mxu0 0
  %61 = vmatpush1.bf16.msra.mxu0 0
  %62 = vmatprep.subr.bf16.mxu0 0
  %63 = vmatpush1.bf16.msra.mxu0 0
  %64 = vmatprep.subr.bf16.mxu0 0
  %65 = vmatpush1.bf16.msra.mxu0 %v44
  %66 = vmatprep.subr.bf16.mxu0 0
  %67 = vmatpush2.bf16.msra.mxu0 0
  %68 = vmatprep.subr.bf16.mxu0 0
  %69 = vmatpush2.bf16.msra.mxu0 0
  %70 = vmatprep.subr.bf16.mxu0 0
  %71 = vmatpush2.bf16.msra.mxu0 0
  %72 = vmatprep.subr.bf16.mxu0 0
  %73 = vmatpush2.bf16.msra.mxu0 0
  %74 = vmatprep.subr.bf16.mxu0 0
  %75 = vmatpush2.bf16.msra.mxu0 0
  %76 = vmatprep.subr.bf16.mxu0 0
  %77 = vmatpush2.bf16.msra.mxu0 0
  %78 = vmatprep.subr.bf16.mxu0 0
  %79 = vmatpush2.bf16.msra.mxu0 0
  %80 = vmatprep.subr.bf16.mxu0 0
  %81 = vmatpush2.bf16.msra.mxu0 0
  %82 = vmatprep.mubr.bf16.mxu0 0
  %83 = vmatmul.mubr.bf16.gmra.mxu0 %v48
  %v84 = vpop.f32.mrf.mxu0
  %v85 = vadd.f32 %v38, %v84
  %v86 = vpop.f32.mrf.mxu0
  %v87 = vpop.f32.mrf.mxu0
  %v88 = vpop.f32.mrf.mxu0
  %89 = vdwg.mxu0
  %vm90 = vcmp.gt.f32.partialorder %v85, 0.0
  %v91 = vmul.f32 %v85, 0.1
  %v92 = vsel %vm90, %v85, %v91
  %v93 = vpack.c.bf16 %v92, %v92
  %v94 = vld [vmem:[%s3] sm:$0xf]
  %v95 = vld [vmem:[%s3 + $0x4] sm:$0xf]
  %v96 = vld [vmem:[%s3 + $0x8] sm:$0xf]
  %v97 = vld [vmem:[%s3 + $0xc] sm:$0xf]
  %v98 = vld [vmem:[%s4] sm:$0x1]
  %v100 = vlaneseq
  %v101 = vshrl.u32 %v100, 7
  %v102 = vsub.s32 0, %v101
  %v103 = vrot.slane %v98, %v102
  %v109 = vunpack.c.l.b16 %v94
  %v110 = vunpack.c.l.b16 %v95
  %v111 = vunpack.c.l.b16 %v96
  %v112 = vunpack.c.l.b16 %v97
  %v113 = vpack.c.b16 %v110, %v109
  %v114 = vpack.c.b16 %v112, %v111
  %vm117 = vcmask 261120
  %v119 = vsel %vm117, %v93, 0
  %121 = vmatprep.subr.bf16.mxu0 0
  %122 = vmatpush1.bf16.msra.mxu0 0
  %123 = vmatprep.subr.bf16.mxu0 0
  %124 = vmatpush1.bf16.msra.mxu0 0
  %125 = vmatprep.subr.bf16.mxu0 0
  %126 = vmatpush1.bf16.msra.mxu0 0
  %127 = vmatprep.subr.bf16.mxu0 0
  %128 = vmatpush1.bf16.msra.mxu0 0
  %129 = vmatprep.subr.bf16.mxu0 0
  %130 = vmatpush1.bf16.msra.mxu0 0
  %131 = vmatprep.subr.bf16.mxu0 0
  %132 = vmatpush1.bf16.msra.mxu0 0
  %133 = vmatprep.subr.bf16.mxu0 0
  %134 = vmatpush1.bf16.msra.mxu0 %v114
  %135 = vmatprep.subr.bf16.mxu0 0
  %136 = vmatpush1.bf16.msra.mxu0 %v113
  %137 = vmatprep.subr.bf16.mxu0 0
  %138 = vmatpush2.bf16.msra.mxu0 0
  %139 = vmatprep.subr.bf16.mxu0 0
  %140 = vmatpush2.bf16.msra.mxu0 0
  %141 = vmatprep.subr.bf16.mxu0 0
  %142 = vmatpush2.bf16.msra.mxu0 0
  %143 = vmatprep.subr.bf16.mxu0 0
  %144 = vmatpush2.bf16.msra.mxu0 0
  %145 = vmatprep.subr.bf16.mxu0 0
  %146 = vmatpush2.bf16.msra.mxu0 0
  %147 = vmatprep.subr.bf16.mxu0 0
  %148 = vmatpush2.bf16.msra.mxu0 0
  %149 = vmatprep.subr.bf16.mxu0 0
  %150 = vmatpush2.bf16.msra.mxu0 0
  %151 = vmatprep.subr.bf16.mxu0 0
  %152 = vmatpush2.bf16.msra.mxu0 0
  %153 = vmatprep.mubr.bf16.mxu0 0
  %154 = vmatmul.mubr.bf16.gmra.mxu0 %v119
  %v155 = vpop.f32.mrf.mxu0
  %v156 = vadd.f32 %v103, %v155
  %v157 = vpop.f32.mrf.mxu0
  %v158 = vpop.f32.mrf.mxu0
  %v159 = vpop.f32.mrf.mxu0
  %160 = vdwg.mxu0
  %vm161 = vcmp.gt.f32.partialorder %v156, 0.0
  %v162 = vmul.f32 %v156, 0.1
  %v163 = vsel %vm161, %v156, %v162
  %v164 = vpack.c.bf16 %v163, %v163
  %v165 = vld [vmem:[%s5] sm:$0xf]
  %v166 = vld [vmem:[%s5 + $0x4] sm:$0xf]
  %v167 = vld [vmem:[%s5 + $0x8] sm:$0xf]
  %v168 = vld [vmem:[%s5 + $0xc] sm:$0xf]
  %v169 = vld [vmem:[#allocation2] sm:$0x1]
  %v171 = vlaneseq
  %v172 = vshrl.u32 %v171, 7
  %v173 = vsub.s32 0, %v172
  %v174 = vrot.slane %v169, %v173
  %v180 = vunpack.c.l.b16 %v165
  %v181 = vunpack.c.l.b16 %v166
  %v182 = vunpack.c.l.b16 %v167
  %v183 = vunpack.c.l.b16 %v168
  %v184 = vpack.c.b16 %v181, %v180
  %v185 = vpack.c.b16 %v183, %v182
  %v189 = vsel %vm117, %v164, 0
  %191 = vmatprep.subr.bf16.mxu0 0
  %192 = vmatpush1.bf16.msra.mxu0 0
  %193 = vmatprep.subr.bf16.mxu0 0
  %194 = vmatpush1.bf16.msra.mxu0 0
  %195 = vmatprep.subr.bf16.mxu0 0
  %196 = vmatpush1.bf16.msra.mxu0 0
  %197 = vmatprep.subr.bf16.mxu0 0
  %198 = vmatpush1.bf16.msra.mxu0 0
  %199 = vmatprep.subr.bf16.mxu0 0
  %200 = vmatpush1.bf16.msra.mxu0 0
  %201 = vmatprep.subr.bf16.mxu0 0
  %202 = vmatpush1.bf16.msra.mxu0 0
  %203 = vmatprep.subr.bf16.mxu0 0
  %204 = vmatpush1.bf16.msra.mxu0 %v185
  %205 = vmatprep.subr.bf16.mxu0 0
  %206 = vmatpush1.bf16.msra.mxu0 %v184
  %207 = vmatprep.subr.bf16.mxu0 0
  %208 = vmatpush2.bf16.msra.mxu0 0
  %209 = vmatprep.subr.bf16.mxu0 0
  %210 = vmatpush2.bf16.msra.mxu0 0
  %211 = vmatprep.subr.bf16.mxu0 0
  %212 = vmatpush2.bf16.msra.mxu0 0
  %213 = vmatprep.subr.bf16.mxu0 0
  %214 = vmatpush2.bf16.msra.mxu0 0
  %215 = vmatprep.subr.bf16.mxu0 0
  %216 = vmatpush2.bf16.msra.mxu0 0
  %217 = vmatprep.subr.bf16.mxu0 0
  %218 = vmatpush2.bf16.msra.mxu0 0
  %219 = vmatprep.subr.bf16.mxu0 0
  %220 = vmatpush2.bf16.msra.mxu0 0
  %221 = vmatprep.subr.bf16.mxu0 0
  %222 = vmatpush2.bf16.msra.mxu0 0
  %223 = vmatprep.mubr.bf16.mxu0 0
  %224 = vmatmul.mubr.bf16.gmra.mxu0 %v189
  %v225 = vpop.f32.mrf.mxu0
  %v226 = vadd.f32 %v174, %v225
  %v227 = vpop.f32.mrf.mxu0
  %v228 = vpop.f32.mrf.mxu0
  %v229 = vpop.f32.mrf.mxu0
  %230 = vdwg.mxu0
  %v231 = vxor.u32 %v226, 2147483648
  %v232 = vmul.f32 %v231, 1.442695
  %v233 = vpow.pop %v232
  %v234 = vadd.f32 %v233, 1.0
  %v235 = vrcp.pop %v234
  %v236 = vmul.f32 1.0, %v235
  %vm237 = vcmask 7168
  %238 = vst.msk [vmem:[%s7] sm:$0xff] %vm237, %v236
  // Predicated region
  $region30: #{deep_mlp_d_forward.1} parent=0 // pred_check
    _
  $region31: #{deep_mlp_d_forward.1} parent=0 // pred_check_branch
    %240 = sbr.rel (0) target = $region33
  $region32: #{deep_mlp_d_forward.1} parent=0 // pred_region
    _
  $region33: #{deep_mlp_d_forward.1} parent=0 // pred_fallthru
    _
  // Predicated region
  $region34: #{deep_mlp_d_forward.1} parent=0 // pred_check
    _
  $region35: #{deep_mlp_d_forward.1} parent=0 // pred_check_branch
    %242 = sbr.rel (0) target = $region37
  $region36: #{deep_mlp_d_forward.1} parent=0 // pred_region
    _
  $region37: #{deep_mlp_d_forward.1} parent=0 // pred_fallthru
    _

</llo_original>
